<compile_context>
chip_gen: v7x
topology: tpu7x:2x2x1
jax: 0.10.0
libtpu: 0.0.40
codegen_flags: <defaults>
</compile_context>

<pallas_src>
import functools

import jax
import jax.numpy as jnp
from jax.experimental import pallas as pl
from jax.experimental.pallas import tpu as pltpu


def _attention_kernel(enc_ref, dec_ref, we_ref, wd_ref, b_ref, v_ref,
                      ctx_ref, attn_ref, *, seq_valid):
    bB, S, H = enc_ref.shape
    A = we_ref.shape[1]

    enc = enc_ref[...]                                   # [bB, S, H]
    dec = dec_ref[...]                                   # [bB, H]

    # Encoder projection: one large-M MXU matmul on the flattened block.
    # (S is padded to a multiple of 8 in the wrapper -> free relayout.)
    enc_proj = jnp.dot(enc.reshape(bB * S, H), we_ref[...],
                       preferred_element_type=jnp.float32).reshape(bB, S, A)

    # Decoder projection (seq-invariant) with the bias folded in.
    dec_proj = jnp.dot(dec, wd_ref[...],
                       preferred_element_type=jnp.float32) + b_ref[...]    # [bB, A]

    energy = jnp.tanh(enc_proj + dec_proj[:, None, :])                     # [bB, S, A]

    # v-projection as VPU multiply + lane reduce; keep S on the sublane axis.
    scores = jnp.sum(energy * v_ref[...], axis=-1, keepdims=True)          # [bB, S, 1]

    if seq_valid < S:
        pos = jax.lax.broadcasted_iota(jnp.int32, (bB, S, 1), 1)
        scores = jnp.where(pos < seq_valid, scores, -1e30)

    # Softmax over the (sublane) sequence axis, f32 throughout.
    m = jnp.max(scores, axis=1, keepdims=True)                             # [bB, 1, 1]
    e = jnp.exp(scores - m)
    denom = jnp.sum(e, axis=1, keepdims=True)                              # [bB, 1, 1]
    weights = e * pl.reciprocal(denom, approx=False)                       # [bB, S, 1]

    # Context as broadcast-multiply + sublane reduce (no layout churn on the
    # large [bB,S,H] operand; MXU would be idle here anyway).
    context = jnp.sum(weights * enc, axis=1)                               # [bB, H]

    ctx_ref[...] = context.astype(ctx_ref.dtype)                           # [bB, H]
    attn_ref[...] = weights[:, :, 0].astype(attn_ref.dtype)                # [bB, S]


def _pick_block_b(B, S, H, A):
    """Batch-block size.

    Constraints/policy:
      * bB is a multiple of 8 (sublane-aligned, unmasked batch-row stores) or
        bB == B (block == full dim is always legal).
      * Padded-dim VMEM footprint (double-buffered ins/outs, resident weights,
        broadcast temp) must fit a v7x-safe budget.
      * enc block capped at ~2 MiB (HBM-bound kernel; bigger blocks only burn
        VMEM and coarsen the pipeline).
      * Prefer a grid of >= 8 steps; among those, the largest block.
    """
    def rup(x, m):
        return ((x + m - 1) // m) * m

    Hl = rup(H, 128)          # lane-padded H
    Al = rup(A, 128)          # lane-padded A
    Sl = rup(S, 128)          # lane-padded S (attn-output lane axis)
    Sp = rup(S, 8)            # sublane-padded S

    try:
        vmem_cap = pltpu.get_tpu_info().vmem_capacity_bytes
    except Exception:
        vmem_cap = 64 << 20                      # v7x-safe fallback
    budget = min(vmem_cap // 4, 16 << 20)        # headroom under the 32 MiB scoped limit
    enc_block_cap = 2 << 20                      # ~roofline already at ~1-2 MiB blocks

    resident = 4 * (2 * rup(H, 8) * Al + 2 * 8 * Al)   # W_enc, W_dec, bias, v (padded)

    def enc_block_bytes(bb):
        return 4 * rup(bb, 8) * Sp * Hl

    def footprint(bb):
        bbp = rup(bb, 8)
        enc_in = 2 * enc_block_bytes(bb)                 # double-buffered enc input
        dec_in = 2 * 4 * bbp * Hl                        # double-buffered dec input
        ctx_out = 2 * 4 * bbp * Hl                       # double-buffered ctx output
        attn_out = 2 * 4 * bbp * Sl                      # double-buffered attn output
        # Transients: enc_proj + energy [bb,S,A], weights*enc product [bb,S,H],
        # scores/exp/weights columns [bb,S,1] (lane-padded).
        temps = 4 * bbp * Sp * (2 * Al + Hl + 3 * 128)
        return resident + enc_in + dec_in + ctx_out + attn_out + temps

    candidates = [d for d in range(8, B + 1, 8) if B % d == 0]
    if B not in candidates:
        candidates.append(B)                     # block == full dim is always legal
    candidates.sort()

    passing = [d for d in candidates
               if footprint(d) <= budget and enc_block_bytes(d) <= enc_block_cap]
    if not passing:
        passing = [candidates[0]]                # smallest legal block as fallback

    # Prefer >= 8 grid steps (pipeline overlap / both v7x cores fed); among
    # equally-good step counts, take the largest block.
    return max(passing, key=lambda d: (min(B // d, 8), d))


def luong_concat_attention(encoder_outputs, decoder_hidden, W, b, v_row):
    B, S, H = encoder_outputs.shape
    two_h, A = W.shape
    assert two_h == 2 * H
    assert decoder_hidden.shape == (B, H)

    # Pad S to a multiple of 8 so the in-kernel (bB*S, H) flatten is free.
    S_pad = ((S + 7) // 8) * 8
    enc_in = encoder_outputs
    if S_pad != S:
        enc_in = jnp.pad(encoder_outputs, ((0, 0), (0, S_pad - S), (0, 0)))

    bB = _pick_block_b(B, S_pad, H, A)
    grid = (B // bB,)

    W_enc = W[:H, :]                      # [H, A]
    W_dec = W[H:, :]                      # [H, A]
    b2 = b.reshape(1, A)
    v2 = v_row.reshape(1, A)

    kernel = functools.partial(_attention_kernel, seq_valid=S)

    flops = (2 * B * S * H * A) + (2 * B * H * A) + (4 * B * S * A) \
            + (2 * B * S * H) + 6 * B * S
    transcendentals = B * S * A + B * S
    bytes_accessed = 4 * (B * S * H + B * H + 2 * H * A + 2 * A + B * H + B * S)

    ctx, attn = pl.pallas_call(
        kernel,
        grid=grid,
        in_specs=[
            pl.BlockSpec((bB, S_pad, H), lambda i: (i, 0, 0)),  # enc: tiled over batch
            pl.BlockSpec((bB, H), lambda i: (i, 0)),            # dec (2-D, dense)
            pl.BlockSpec((H, A), lambda i: (0, 0)),             # W_enc (resident)
            pl.BlockSpec((H, A), lambda i: (0, 0)),             # W_dec (resident)
            pl.BlockSpec((1, A), lambda i: (0, 0)),             # bias
            pl.BlockSpec((1, A), lambda i: (0, 0)),             # v row
        ],
        out_specs=(
            pl.BlockSpec((bB, H), lambda i: (i, 0)),            # context (dense 2-D)
            pl.BlockSpec((bB, S_pad), lambda i: (i, 0)),        # attn weights (dense 2-D)
        ),
        out_shape=(
            jax.ShapeDtypeStruct((B, H), jnp.float32),
            jax.ShapeDtypeStruct((B, S_pad), jnp.float32),
        ),
        compiler_params=pltpu.CompilerParams(
            dimension_semantics=("parallel",),
            vmem_limit_bytes=32 << 20,
        ),
        cost_estimate=pl.CostEstimate(
            flops=flops,
            transcendentals=transcendentals,
            bytes_accessed=bytes_accessed,
        ),
    )(enc_in, decoder_hidden, W_enc, W_dec, b2, v2)

    return ctx, attn[:, :S]


if __name__ == "__main__":
    B, S, H, A = 2, 8, 32, 16

    key = jax.random.PRNGKey(0)
    k_enc, k_dec, k_w, k_b, k_v = jax.random.split(key, 5)

    encoder_outputs = jax.random.normal(k_enc, (B, S, H), dtype=jnp.float32)
    decoder_hidden = jax.random.normal(k_dec, (B, H), dtype=jnp.float32)

    # Deterministic parameter init (torch nn.Linear shapes: linear [A, 2H] + [A];
    # v [1, A]). Linear weight stored transposed for the x @ W convention.
    bound1 = 1.0 / jnp.sqrt(2.0 * H)
    W = jax.random.uniform(k_w, (2 * H, A), jnp.float32, -bound1, bound1)
    b = jax.random.uniform(k_b, (1, A), jnp.float32, -bound1, bound1)
    bound2 = 1.0 / jnp.sqrt(float(A))
    v_row = jax.random.uniform(k_v, (1, A), jnp.float32, -bound2, bound2)

    fwd = jax.jit(luong_concat_attention)
    context, attn_weights = fwd(encoder_outputs, decoder_hidden, W, b, v_row)
    jax.block_until_ready((context, attn_weights))

    # Pure-JAX reference matching the torch module semantics (mask=None path).
    dec_exp = jnp.broadcast_to(decoder_hidden[:, None, :], (B, S, H))
    concat_in = jnp.concatenate([encoder_outputs, dec_exp], axis=2)
    energy_ref = jnp.tanh(concat_in @ W + b)
    scores_ref = jnp.einsum('bsa,a->bs', energy_ref, v_row[0])
    weights_ref = jax.nn.softmax(scores_ref, axis=1)
    context_ref = jnp.einsum('bs,bsh->bh', weights_ref, encoder_outputs)

    assert jnp.allclose(context, context_ref, atol=1e-5, rtol=1e-5)
    assert jnp.allclose(attn_weights, weights_ref, atol=1e-5, rtol=1e-5)

    print("KERNEL_OK")
</pallas_src>

<mosaic_0001>
module attributes {stable_mosaic.version = 11 : i64} {
  func.func @_attention_kernel(%arg0: i32, %arg1: memref<2x8x32xf32, #tpu.memory_space<vmem>>, %arg2: memref<2x32xf32, #tpu.memory_space<vmem>>, %arg3: memref<32x16xf32, #tpu.memory_space<vmem>>, %arg4: memref<32x16xf32, #tpu.memory_space<vmem>>, %arg5: memref<1x16xf32, #tpu.memory_space<vmem>>, %arg6: memref<1x16xf32, #tpu.memory_space<vmem>>, %arg7: memref<2x32xf32, #tpu.memory_space<vmem>>, %arg8: memref<2x8xf32, #tpu.memory_space<vmem>>) attributes {dimension_semantics = [#tpu.dimension_semantics<parallel>], iteration_bounds = array<i64: 1>, scalar_prefetch = 0 : i64, scratch_operands = 0 : i64, tpu.core_type = #tpu.core_type<tc>, window_params = [{transform_indices = @transform_0, window_bounds = array<i64: 2, 8, 32>}, {transform_indices = @transform_1, window_bounds = array<i64: 2, 32>}, {pipeline_mode = #tpu.pipeline_mode<synchronous>, transform_indices = @transform_2, window_bounds = array<i64: 32, 16>}, {pipeline_mode = #tpu.pipeline_mode<synchronous>, transform_indices = @transform_3, window_bounds = array<i64: 32, 16>}, {pipeline_mode = #tpu.pipeline_mode<synchronous>, transform_indices = @transform_4, window_bounds = array<i64: 1, 16>}, {pipeline_mode = #tpu.pipeline_mode<synchronous>, transform_indices = @transform_5, window_bounds = array<i64: 1, 16>}, {transform_indices = @transform_6, window_bounds = array<i64: 2, 32>}, {transform_indices = @transform_7, window_bounds = array<i64: 2, 8>}]} {
    %c0 = arith.constant 0 : index
    %c0_0 = arith.constant 0 : index
    %c0_1 = arith.constant 0 : index
    %0 = vector.load %arg1[%c0, %c0_0, %c0_1] : memref<2x8x32xf32, #tpu.memory_space<vmem>>, vector<2x8x32xf32>
    %c0_2 = arith.constant 0 : index
    %c0_3 = arith.constant 0 : index
    %1 = vector.load %arg2[%c0_2, %c0_3] : memref<2x32xf32, #tpu.memory_space<vmem>>, vector<2x32xf32>
    %2 = vector.shape_cast %0 : vector<2x8x32xf32> to vector<16x32xf32>
    %c0_4 = arith.constant 0 : index
    %c0_5 = arith.constant 0 : index
    %3 = vector.load %arg3[%c0_4, %c0_5] : memref<32x16xf32, #tpu.memory_space<vmem>>, vector<32x16xf32>
    %cst = arith.constant dense<0.000000e+00> : vector<16x16xf32>
    %4 = tpu.matmul %2, %3, %cst {dimension_numbers = #tpu.dot_dimension_numbers<[1], [0], [0], [1], [0, 0, 1, 1], [], []>} : vector<16x32xf32>, vector<32x16xf32>, vector<16x16xf32> -> vector<16x16xf32>
    %5 = vector.shape_cast %4 : vector<16x16xf32> to vector<2x8x16xf32>
    %c0_6 = arith.constant 0 : index
    %c0_7 = arith.constant 0 : index
    %6 = vector.load %arg4[%c0_6, %c0_7] : memref<32x16xf32, #tpu.memory_space<vmem>>, vector<32x16xf32>
    %cst_8 = arith.constant dense<0.000000e+00> : vector<2x16xf32>
    %7 = tpu.matmul %1, %6, %cst_8 {dimension_numbers = #tpu.dot_dimension_numbers<[1], [0], [0], [1], [0, 0, 1, 1], [], []>} : vector<2x32xf32>, vector<32x16xf32>, vector<2x16xf32> -> vector<2x16xf32>
    %c0_9 = arith.constant 0 : index
    %c0_10 = arith.constant 0 : index
    %8 = vector.load %arg5[%c0_9, %c0_10] : memref<1x16xf32, #tpu.memory_space<vmem>>, vector<1x16xf32>
    %9 = vector.broadcast %8 : vector<1x16xf32> to vector<2x16xf32>
    %10 = arith.addf %7, %9 : vector<2x16xf32>
    %11 = vector.shape_cast %10 : vector<2x16xf32> to vector<2x1x16xf32>
    %12 = vector.broadcast %11 : vector<2x1x16xf32> to vector<2x8x16xf32>
    %13 = arith.addf %5, %12 : vector<2x8x16xf32>
    %14 = math.tanh %13 : vector<2x8x16xf32>
    %c0_11 = arith.constant 0 : index
    %c0_12 = arith.constant 0 : index
    %15 = vector.load %arg6[%c0_11, %c0_12] : memref<1x16xf32, #tpu.memory_space<vmem>>, vector<1x16xf32>
    %16 = vector.shape_cast %15 : vector<1x16xf32> to vector<1x1x16xf32>
    %17 = vector.broadcast %16 : vector<1x1x16xf32> to vector<2x8x16xf32>
    %18 = arith.mulf %14, %17 : vector<2x8x16xf32>
    %cst_13 = arith.constant dense<0.000000e+00> : vector<2x8xf32>
    %19 = vector.multi_reduction <add>, %18, %cst_13 [2] : vector<2x8x16xf32> to vector<2x8xf32>
    %20 = vector.shape_cast %19 : vector<2x8xf32> to vector<2x8x1xf32>
    %cst_14 = arith.constant dense<0xFF800000> : vector<2x1xf32>
    %21 = vector.multi_reduction <maximumf>, %20, %cst_14 [1] : vector<2x8x1xf32> to vector<2x1xf32>
    %22 = vector.shape_cast %21 : vector<2x1xf32> to vector<2x1x1xf32>
    %23 = vector.broadcast %22 : vector<2x1x1xf32> to vector<2x8x1xf32>
    %24 = arith.subf %20, %23 : vector<2x8x1xf32>
    %25 = math.exp %24 : vector<2x8x1xf32>
    %cst_15 = arith.constant dense<0.000000e+00> : vector<2x1xf32>
    %26 = vector.multi_reduction <add>, %25, %cst_15 [1] : vector<2x8x1xf32> to vector<2x1xf32>
    %27 = vector.shape_cast %26 : vector<2x1xf32> to vector<2x1x1xf32>
    %28 = tpu.reciprocal %27 : vector<2x1x1xf32> -> vector<2x1x1xf32>
    %29 = vector.broadcast %28 : vector<2x1x1xf32> to vector<2x8x1xf32>
    %30 = arith.mulf %25, %29 : vector<2x8x1xf32>
    %31 = vector.broadcast %30 : vector<2x8x1xf32> to vector<2x8x32xf32>
    %32 = arith.mulf %31, %0 : vector<2x8x32xf32>
    %cst_16 = arith.constant dense<0.000000e+00> : vector<2x32xf32>
    %33 = vector.multi_reduction <add>, %32, %cst_16 [1] : vector<2x8x32xf32> to vector<2x32xf32>
    %c0_17 = arith.constant 0 : index
    %c0_18 = arith.constant 0 : index
    %34 = vector.load %arg7[%c0_17, %c0_18] : memref<2x32xf32, #tpu.memory_space<vmem>>, vector<2x32xf32>
    tpu.vector_store %arg7[%c0_17, %c0_18], %33 {strides = array<i32>} : memref<2x32xf32, #tpu.memory_space<vmem>>, vector<2x32xf32>,
    %35 = vector.shape_cast %30 : vector<2x8x1xf32> to vector<2x8xf32>
    %c0_19 = arith.constant 0 : index
    %c0_20 = arith.constant 0 : index
    %36 = vector.load %arg8[%c0_19, %c0_20] : memref<2x8xf32, #tpu.memory_space<vmem>>, vector<2x8xf32>
    tpu.vector_store %arg8[%c0_19, %c0_20], %35 {strides = array<i32>} : memref<2x8xf32, #tpu.memory_space<vmem>>, vector<2x8xf32>,
    return
  }
  func.func @transform_0(%arg0: i32) -> (i32, i32, i32) {
    %c0_i32 = arith.constant 0 : i32
    %c0_i32_0 = arith.constant 0 : i32
    %c0_i32_1 = arith.constant 0 : i32
    return %arg0, %c0_i32, %c0_i32_0 : i32, i32, i32
  }
  func.func @transform_1(%arg0: i32) -> (i32, i32) {
    %c0_i32 = arith.constant 0 : i32
    %c0_i32_0 = arith.constant 0 : i32
    return %arg0, %c0_i32 : i32, i32
  }
  func.func @transform_2(%arg0: i32) -> (i32, i32) {
    %c0_i32 = arith.constant 0 : i32
    %c0_i32_0 = arith.constant 0 : i32
    %c0_i32_1 = arith.constant 0 : i32
    return %c0_i32, %c0_i32_0 : i32, i32
  }
  func.func @transform_3(%arg0: i32) -> (i32, i32) {
    %c0_i32 = arith.constant 0 : i32
    %c0_i32_0 = arith.constant 0 : i32
    %c0_i32_1 = arith.constant 0 : i32
    return %c0_i32, %c0_i32_0 : i32, i32
  }
  func.func @transform_4(%arg0: i32) -> (i32, i32) {
    %c0_i32 = arith.constant 0 : i32
    %c0_i32_0 = arith.constant 0 : i32
    %c0_i32_1 = arith.constant 0 : i32
    return %c0_i32, %c0_i32_0 : i32, i32
  }
  func.func @transform_5(%arg0: i32) -> (i32, i32) {
    %c0_i32 = arith.constant 0 : i32
    %c0_i32_0 = arith.constant 0 : i32
    %c0_i32_1 = arith.constant 0 : i32
    return %c0_i32, %c0_i32_0 : i32, i32
  }
  func.func @transform_6(%arg0: i32) -> (i32, i32) {
    %c0_i32 = arith.constant 0 : i32
    %c0_i32_0 = arith.constant 0 : i32
    return %arg0, %c0_i32 : i32, i32
  }
  func.func @transform_7(%arg0: i32) -> (i32, i32) {
    %c0_i32 = arith.constant 0 : i32
    %c0_i32_0 = arith.constant 0 : i32
    return %arg0, %c0_i32 : i32, i32
  }
}

</mosaic_0001>

<llo_original>
// kernel: luong_concat_attention.1
$region0: #{luong_concat_attention.1}
  #allocation0 [shape = 'u32[]', space=smem, size = 0x4, offset = 0x4, fixed_abs, tag = 'smem constant byte address 0x4 - core index']
  #allocation1 [shape = 'u32[144,128]{1,0:T(1,128)}', space=vmem, size = 0x12000, scoped, tag = 'internal scratch']
  %s0 = inlined_call_operand.vmem [shape: f32[2,8,32], index: 0, kind: input, shape index: {}]
  %s1 = inlined_call_operand.vmem [shape: f32[2,32], index: 1, kind: input, shape index: {}]
  %s2 = inlined_call_operand.vmem [shape: f32[32,16], index: 2, kind: input, shape index: {}]
  %s3 = inlined_call_operand.vmem [shape: f32[32,16], index: 3, kind: input, shape index: {}]
  %s4 = inlined_call_operand.vmem [shape: f32[1,16], index: 4, kind: input, shape index: {}]
  %s5 = inlined_call_operand.vmem [shape: f32[1,16], index: 5, kind: input, shape index: {}]
  %s6 = inlined_call_operand.hbm [shape: f32[2,32], index: 6, kind: output, shape index: {0}]
  %s7 = inlined_call_operand.hbm [shape: f32[2,8], index: 7, kind: output, shape index: {1}]
  %8 = xla_tuple %s6, %s7
  %s9 = sld [smem:[#allocation0]]
  $region42: #{luong_concat_attention.1} parent=0
    _
  %s11 = ssub.s32 1, %s9
  %s12 = scalar_select 0, %s11, %s9
  $region1: #{luong_concat_attention.1} parent=0
    #allocation2 [shape = 'u8[1024]{0}', space=vmem, size = 0x400, scoped, tag = 'output window, operand 0, single buffered']
    #allocation3 [shape = 's32[1]{0}', space=sflag, size = 0x4, scoped, tag = 'scoped memory for luong_concat_attention.1']
    #allocation4 [shape = 'u8[1024]{0}', space=vmem, size = 0x400, scoped, tag = 'output window, operand 1, single buffered']
    #allocation5 [shape = 's32[1]{0}', space=sflag, size = 0x4, scoped, tag = 'scoped memory for luong_concat_attention.1']
    %13 = vsyncpa [#allocation3], 0
    %14 = vsyncpa [#allocation5], 0
    // Predicated region
    $region2: #{luong_concat_attention.1} parent=1 // pred_check
      _
    $region3: #{luong_concat_attention.1} parent=1 // pred_check_branch
      %16 = sbr.rel (0) target = $region5
    $region4: #{luong_concat_attention.1} parent=1 // pred_region
      _
    $region5: #{luong_concat_attention.1} parent=1 // pred_fallthru
      _
    // Predicated region
    $region6: #{luong_concat_attention.1} parent=1 // pred_check
      _
    $region7: #{luong_concat_attention.1} parent=1 // pred_check_branch
      %18 = sbr.rel (0) target = $region9
    $region8: #{luong_concat_attention.1} parent=1 // pred_region
      _
    $region9: #{luong_concat_attention.1} parent=1 // pred_fallthru
      _
    // Predicated region
    $region10: #{luong_concat_attention.1} parent=1 // pred_check
      _
    $region11: #{luong_concat_attention.1} parent=1 // pred_check_branch
      %20 = sbr.rel (0) target = $region13
    $region12: #{luong_concat_attention.1} parent=1 // pred_region
      _
    $region13: #{luong_concat_attention.1} parent=1 // pred_fallthru
      _
    // Predicated region
    $region14: #{luong_concat_attention.1} parent=1 // pred_check
      _
    $region15: #{luong_concat_attention.1} parent=1 // pred_check_branch
      %22 = sbr.rel (0) target = $region17
    $region16: #{luong_concat_attention.1} parent=1 // pred_region
      _
    $region17: #{luong_concat_attention.1} parent=1 // pred_fallthru
      _
    // Predicated region
    $region18: #{luong_concat_attention.1} parent=1 // pred_check
      _
    $region19: #{luong_concat_attention.1} parent=1 // pred_check_branch
      %24 = sbr.rel (0) target = $region21
    $region20: #{luong_concat_attention.1} parent=1 // pred_region
      _
    $region21: #{luong_concat_attention.1} parent=1 // pred_fallthru
      _
    // Predicated region
    $region22: #{luong_concat_attention.1} parent=1 // pred_check
      _
    $region23: #{luong_concat_attention.1} parent=1 // pred_check_branch
      %26 = sbr.rel (0) target = $region25
    $region24: #{luong_concat_attention.1} parent=1 // pred_region
      _
    $region25: #{luong_concat_attention.1} parent=1 // pred_fallthru
      _
    %v27 = vld [vmem:[%s0] sm:$0xff]
    %v28 = vld [vmem:[%s0 + $0x8] sm:$0xff]
    %v29 = vld [vmem:[%s1] sm:$0x3]
    %v30 = vld [vmem:[%s2] sm:$0xff]
    %v31 = vld [vmem:[%s2 + $0x8] sm:$0xff]
    %v32 = vld [vmem:[%s2 + $0x10] sm:$0xff]
    %v33 = vld [vmem:[%s2 + $0x18] sm:$0xff]
    %vm34 = vcmask 261120
    %v36 = vsel %vm34, %v27, 0
    %v39 = vsel %vm34, %v28, 0
    %41 = vmatprep.subr.mxu0 0.0
    %42 = vmatpush1.msra.mxu0 %v30
    %43 = vmatprep.subr.mxu0 0.0
    %44 = vmatpush1.msra.mxu0 %v31
    %45 = vmatprep.subr.mxu0 0.0
    %46 = vmatpush1.msra.mxu0 %v32
    %47 = vmatprep.subr.mxu0 0.0
    %48 = vmatpush1.msra.mxu0 %v33
    %49 = vmatprep.subr.mxu0 0.0
    %50 = vmatpush1.msra.mxu0 0.0
    %51 = vmatprep.subr.mxu0 0.0
    %52 = vmatpush1.msra.mxu0 0.0
    %53 = vmatprep.subr.mxu0 0.0
    %54 = vmatpush1.msra.mxu0 0.0
    %55 = vmatprep.subr.mxu0 0.0
    %56 = vmatpush1.msra.mxu0 0.0
    %57 = vmatprep.subr.mxu0 0.0
    %58 = vmatpush1.msra.mxu0 0.0
    %59 = vmatprep.subr.mxu0 0.0
    %60 = vmatpush1.msra.mxu0 0.0
    %61 = vmatprep.subr.mxu0 0.0
    %62 = vmatpush1.msra.mxu0 0.0
    %63 = vmatprep.subr.mxu0 0.0
    %64 = vmatpush1.msra.mxu0 0.0
    %65 = vmatprep.subr.mxu0 0.0
    %66 = vmatpush1.msra.mxu0 0.0
    %67 = vmatprep.subr.mxu0 0.0
    %68 = vmatpush1.msra.mxu0 0.0
    %69 = vmatprep.subr.mxu0 0.0
    %70 = vmatpush1.msra.mxu0 0.0
    %71 = vmatprep.subr.mxu0 0.0
    %72 = vmatpush1.msra.mxu0 0.0
    %73 = vmatprep.subr.mxu0 0.0
    %74 = vmatpush1.msra.mxu0 0.0
    %75 = vmatprep.subr.mxu0 0.0
    %76 = vmatpush1.msra.mxu0 0.0
    %77 = vmatprep.subr.mxu0 0.0
    %78 = vmatpush1.msra.mxu0 0.0
    %79 = vmatprep.subr.mxu0 0.0
    %80 = vmatpush1.msra.mxu0 0.0
    %81 = vmatprep.subr.mxu0 0.0
    %82 = vmatpush1.msra.mxu0 0.0
    %83 = vmatprep.subr.mxu0 0.0
    %84 = vmatpush1.msra.mxu0 0.0
    %85 = vmatprep.subr.mxu0 0.0
    %86 = vmatpush1.msra.mxu0 0.0
    %87 = vmatprep.subr.mxu0 0.0
    %88 = vmatpush1.msra.mxu0 0.0
    %89 = vmatprep.subr.mxu0 0.0
    %90 = vmatpush1.msra.mxu0 0.0
    %91 = vmatprep.subr.mxu0 0.0
    %92 = vmatpush1.msra.mxu0 0.0
    %93 = vmatprep.subr.mxu0 0.0
    %94 = vmatpush1.msra.mxu0 0.0
    %95 = vmatprep.subr.mxu0 0.0
    %96 = vmatpush1.msra.mxu0 0.0
    %97 = vmatprep.subr.mxu0 0.0
    %98 = vmatpush1.msra.mxu0 0.0
    %99 = vmatprep.subr.mxu0 0.0
    %100 = vmatpush1.msra.mxu0 0.0
    %101 = vmatprep.subr.mxu0 0.0
    %102 = vmatpush1.msra.mxu0 0.0
    %103 = vmatprep.subr.mxu0 0.0
    %104 = vmatpush1.msra.mxu0 0.0
    %105 = vmatprep.mubr.f32.mxu0 0.0
    %106 = vmatmul.mubr.f32.gmra.mrb[0].mxu0 %v36
    %v107 = vpop.f32.mrb[0].mxu0
    %v108 = vadd.f32 0.0, %v107
    %v109 = vpop.f32.mrb[0].mxu0
    %110 = vmatprep.mubr.f32.mxu0 0.0
    %111 = vmatmul.mubr.f32.gmra.mrb[0].mxu0 %v39
    %v112 = vpop.f32.mrb[0].mxu0
    %v113 = vadd.f32 0.0, %v112
    %v114 = vpop.f32.mrb[0].mxu0
    %115 = vdwg.mxu0
    %v116 = vld [vmem:[%s3] sm:$0xff]
    %v117 = vld [vmem:[%s3 + $0x8] sm:$0xff]
    %v118 = vld [vmem:[%s3 + $0x10] sm:$0xff]
    %v119 = vld [vmem:[%s3 + $0x18] sm:$0xff]
    %v120 = vld [vmem:[%s4] sm:$0x1]
    %v122 = vlaneseq
    %v123 = vshrl.u32 %v122, 7
    %v124 = vsub.s32 0, %v123
    %v125 = vrot.slane %v120, %v124
    %v128 = vsel %vm34, %v29, 0
    %130 = vmatprep.subr.mxu0 0.0
    %131 = vmatpush1.msra.mxu0 %v116
    %132 = vmatprep.subr.mxu0 0.0
    %133 = vmatpush1.msra.mxu0 %v117
    %134 = vmatprep.subr.mxu0 0.0
    %135 = vmatpush1.msra.mxu0 %v118
    %136 = vmatprep.subr.mxu0 0.0
    %137 = vmatpush1.msra.mxu0 %v119
    %138 = vmatprep.subr.mxu0 0.0
    %139 = vmatpush1.msra.mxu0 0.0
    %140 = vmatprep.subr.mxu0 0.0
    %141 = vmatpush1.msra.mxu0 0.0
    %142 = vmatprep.subr.mxu0 0.0
    %143 = vmatpush1.msra.mxu0 0.0
    %144 = vmatprep.subr.mxu0 0.0
    %145 = vmatpush1.msra.mxu0 0.0
    %146 = vmatprep.subr.mxu0 0.0
    %147 = vmatpush1.msra.mxu0 0.0
    %148 = vmatprep.subr.mxu0 0.0
    %149 = vmatpush1.msra.mxu0 0.0
    %150 = vmatprep.subr.mxu0 0.0
    %151 = vmatpush1.msra.mxu0 0.0
    %152 = vmatprep.subr.mxu0 0.0
    %153 = vmatpush1.msra.mxu0 0.0
    %154 = vmatprep.subr.mxu0 0.0
    %155 = vmatpush1.msra.mxu0 0.0
    %156 = vmatprep.subr.mxu0 0.0
    %157 = vmatpush1.msra.mxu0 0.0
    %158 = vmatprep.subr.mxu0 0.0
    %159 = vmatpush1.msra.mxu0 0.0
    %160 = vmatprep.subr.mxu0 0.0
    %161 = vmatpush1.msra.mxu0 0.0
    %162 = vmatprep.subr.mxu0 0.0
    %163 = vmatpush1.msra.mxu0 0.0
    %164 = vmatprep.subr.mxu0 0.0
    %165 = vmatpush1.msra.mxu0 0.0
    %166 = vmatprep.subr.mxu0 0.0
    %167 = vmatpush1.msra.mxu0 0.0
    %168 = vmatprep.subr.mxu0 0.0
    %169 = vmatpush1.msra.mxu0 0.0
    %170 = vmatprep.subr.mxu0 0.0
    %171 = vmatpush1.msra.mxu0 0.0
    %172 = vmatprep.subr.mxu0 0.0
    %173 = vmatpush1.msra.mxu0 0.0
    %174 = vmatprep.subr.mxu0 0.0
    %175 = vmatpush1.msra.mxu0 0.0
    %176 = vmatprep.subr.mxu0 0.0
    %177 = vmatpush1.msra.mxu0 0.0
    %178 = vmatprep.subr.mxu0 0.0
    %179 = vmatpush1.msra.mxu0 0.0
    %180 = vmatprep.subr.mxu0 0.0
    %181 = vmatpush1.msra.mxu0 0.0
    %182 = vmatprep.subr.mxu0 0.0
    %183 = vmatpush1.msra.mxu0 0.0
    %184 = vmatprep.subr.mxu0 0.0
    %185 = vmatpush1.msra.mxu0 0.0
    %186 = vmatprep.subr.mxu0 0.0
    %187 = vmatpush1.msra.mxu0 0.0
    %188 = vmatprep.subr.mxu0 0.0
    %189 = vmatpush1.msra.mxu0 0.0
    %190 = vmatprep.subr.mxu0 0.0
    %191 = vmatpush1.msra.mxu0 0.0
    %192 = vmatprep.subr.mxu0 0.0
    %193 = vmatpush1.msra.mxu0 0.0
    %194 = vmatprep.mubr.f32.mxu0 0.0
    %195 = vmatmul.mubr.f32.gmra.mrb[0].mxu0 %v128
    %v196 = vpop.f32.mrb[0].mxu0
    %v197 = vadd.f32 %v125, %v196
    %v198 = vpop.f32.mrb[0].mxu0
    %199 = vdwg.mxu0
    %v202 = vunpack.c.l.s4 1966171168
    %v203 = vunpack.c.0.s8 %v202
    %v204 = vlaneseq
    %v205 = vshrl.u32 %v204, 7
    %v206 = vsub.s32 %v203, %v205
    %v207 = vrot.slane %v197, %v206
    %v208 = vcombine.high %v207, %v207
    %v210 = vunpack.c.l.s4 1966171168
    %v211 = vunpack.c.0.s8 %v210
    %v212 = vlaneseq
    %v213 = vshrl.u32 %v212, 7
    %v214 = vsub.s32 %v211, %v213
    %v215 = vrot.slane %v207, %v214
    %v217 = vunpack.c.l.s4 1966171168
    %v218 = vunpack.c.0.s8 %v217
    %v219 = vlaneseq
    %v220 = vshrl.u32 %v219, 7
    %v221 = vsub.s32 %v218, %v220
    %v222 = vrot.slane %v208, %v221
    %v223 = vlaneseq
    %v224 = vshrl.u32 %v223, 7
    %v225 = vsub.s32 0, %v224
    %v226 = vrot.slane %v215, %v225
    %v227 = vlaneseq
    %v228 = vshrl.u32 %v227, 7
    %v229 = vsub.s32 0, %v228
    %v230 = vrot.slane %v222, %v229
    %v233 = vadd.f32 %v108, %v226
    %v234 = vadd.f32 %v113, %v230
    %v235 = vtanh.pop %v233
    %v236 = vtanh.pop %v234
    %v237 = vld [vmem:[%s5] sm:$0x1]
    %v239 = vlaneseq
    %v240 = vshrl.u32 %v239, 7
    %v241 = vsub.s32 0, %v240
    %v242 = vrot.slane %v237, %v241
    %v244 = vmul.f32 %v235, %v242
    %v245 = vmul.f32 %v236, %v242
    %vm246 = vcmask 130048
    %v247 = vsel %vm246, %v244, 0.0
    %248 = vadd.xlane.f32.xlu0 %v247
    %v249 = vpop.xlane.xlu0 %248
    %v250 = vsel %vm246, %v245, 0.0
    %251 = vadd.xlane.f32.xlu0 %v250
    %v252 = vpop.xlane.xlu0 %251
    %v253 = vrot.slane %v249, 4
    %v254 = vmax.f32 %v249, %v253
    %v255 = vrot.slane %v254, 2
    %v256 = vmax.f32 %v254, %v255
    %v257 = vrot.slane %v256, 1
    %v258 = vmax.f32 %v256, %v257
    %v259 = vrot.slane %v252, 4
    %v260 = vmax.f32 %v252, %v259
    %v261 = vrot.slane %v260, 2
    %v262 = vmax.f32 %v260, %v261
    %v263 = vrot.slane %v262, 1
    %v264 = vmax.f32 %v262, %v263
    %v265 = vsub.f32 %v249, %v258
    %v266 = vsub.f32 %v252, %v264
    %v267 = vmul.f32 %v265, 1.442695
    %v268 = vpow.pop %v267
    %v269 = vmul.f32 %v266, 1.442695
    %v270 = vpow.pop %v269
    %v271 = vrot.slane %v268, 4
    %v272 = vadd.f32 %v268, %v271
    %v273 = vrot.slane %v272, 2
    %v274 = vadd.f32 %v272, %v273
    %v275 = vrot.slane %v274, 1
    %v276 = vadd.f32 %v274, %v275
    %v277 = vrot.slane %v270, 4
    %v278 = vadd.f32 %v270, %v277
    %v279 = vrot.slane %v278, 2
    %v280 = vadd.f32 %v278, %v279
    %v281 = vrot.slane %v280, 1
    %v282 = vadd.f32 %v280, %v281
    %v283 = vrcp.pop %v276
    %v284 = vrcp.pop %v282
    %v285 = vmul.f32 %v268, %v283
    %v286 = vmul.f32 %v270, %v284
    %v287 = vmul.f32 %v285, %v27
    %v288 = vmul.f32 %v286, %v28
    %v289 = vsel %vm34, %v287, 0.0
    %v290 = vrot.slane %v289, 4
    %v291 = vadd.f32 %v289, %v290
    %v292 = vrot.slane %v291, 2
    %v293 = vadd.f32 %v291, %v292
    %v294 = vrot.slane %v293, 1
    %v295 = vadd.f32 %v293, %v294
    %v296 = vsel %vm34, %v288, 0.0
    %v297 = vrot.slane %v296, 4
    %v298 = vadd.f32 %v296, %v297
    %v299 = vrot.slane %v298, 2
    %v300 = vadd.f32 %v298, %v299
    %v301 = vrot.slane %v300, 1
    %v302 = vadd.f32 %v300, %v301
    %vm305 = vcmask 1041409
    %v306 = vsel %vm305, %v302, %v295
    %vm308 = vcmask 254976
    %309 = vst.msk [vmem:[#allocation2] sm:$0x3] %vm308, %v306
    %v312 = vlaneseq
    %v313 = vand.u32 %v312, 127
    %v314 = vlaneseq
    %v315 = vshrl.u32 %v314, 7
    %v316 = vsub.s32 %v313, %v315
    %v317 = vrot.slane %v285, %v316
    %v318 = vlaneseq
    %v319 = vshrl.u32 %v318, 7
    %v320 = vsub.s32 %v313, %v319
    %v321 = vrot.slane %v286, %v320
    %v322 = vsel %vm305, %v321, %v317
    %vm324 = vcmask 58368
    %325 = vst.msk [vmem:[#allocation4] sm:$0x3] %vm324, %v322
    // Predicated region
    $region26: #{luong_concat_attention.1} parent=1 // pred_check
      _
    $region27: #{luong_concat_attention.1} parent=1 // pred_check_branch
      %327 = sbr.rel (0) target = $region29
    $region28: #{luong_concat_attention.1} parent=1 // pred_region
      %s329 = ssub.s32 32, 32
      %330 = vsyncadd [#allocation3], %s329
      %s332 = sshll.u32 [#allocation2], 4
      %s333 = int_to_ptr.vmem [resolvable:$true] %s332
      %335 = dma.vmem_to_hbm [thread:$0]  %s333, 32, %s6, [#allocation3]
    $region29: #{luong_concat_attention.1} parent=1 // pred_fallthru
      _
    // Predicated region
    $region30: #{luong_concat_attention.1} parent=1 // pred_check
      _
    $region31: #{luong_concat_attention.1} parent=1 // pred_check_branch
      %337 = sbr.rel (0) target = $region33
    $region32: #{luong_concat_attention.1} parent=1 // pred_region
      %s339 = ssub.s32 32, 32
      %340 = vsyncadd [#allocation5], %s339
      %s342 = sshll.u32 [#allocation4], 4
      %s343 = int_to_ptr.vmem [resolvable:$true] %s342
      %345 = dma.vmem_to_hbm [thread:$0]  %s343, 32, %s7, [#allocation5]
    $region33: #{luong_concat_attention.1} parent=1 // pred_fallthru
      _
    // Predicated region
    $region34: #{luong_concat_attention.1} parent=1 // pred_check
      _
    $region35: #{luong_concat_attention.1} parent=1 // pred_check_branch
      %347 = sbr.rel (0) target = $region37
    $region36: #{luong_concat_attention.1} parent=1 // pred_region
      %348 = dma.done [#allocation3], 32
    $region37: #{luong_concat_attention.1} parent=1 // pred_fallthru
      _
    // Predicated region
    $region38: #{luong_concat_attention.1} parent=1 // pred_check
      _
    $region39: #{luong_concat_attention.1} parent=1 // pred_check_branch
      %350 = sbr.rel (0) target = $region41
    $region40: #{luong_concat_attention.1} parent=1 // pred_region
      %351 = dma.done [#allocation5], 32
    $region41: #{luong_concat_attention.1} parent=1 // pred_fallthru
      _
    %352 = vsyncpa [#allocation3], 1
    %353 = vsyncpa [#allocation5], 1

</llo_original>
